<compile_context>
chip_gen: v7x
topology: tpu7x:2x2x1
jax: 0.10.0
libtpu: 0.0.40
codegen_flags: <defaults>
</compile_context>

<pallas_src>
import jax
import jax.numpy as jnp
from jax.experimental import pallas as pl
from jax.experimental.pallas import tpu as pltpu

_LANE = 128
_SUBLANE = 8


def _round_up(x, m):
    return ((x + m - 1) // m) * m


def _logreg_kernel(x_ref, w_ref, b_ref, o_ref):
    # x_ref: (TM, D) f32, w_ref: (D, O) f32, b_ref: (1, O) f32, o_ref: (TM, O) f32
    logits = jnp.dot(x_ref[...], w_ref[...],
                     preferred_element_type=jnp.float32)   # MXU, f32 accumulate
    o_ref[...] = jax.nn.sigmoid(logits + b_ref[...])        # EUP exp + VPU, f32


def prepare_params(weight, bias):
    """weight: (O, D) torch Linear layout; bias: (O,).
    One-time transpose / reshape outside the kernel call."""
    w_t = jnp.asarray(weight, jnp.float32).T            # (D, O)
    b2d = jnp.asarray(bias, jnp.float32).reshape(1, -1)  # (1, O)
    return w_t, b2d


def _vmem_need_bytes(tm, D, O):
    """Conservative, lane-padding-aware VMEM estimate for one grid step."""
    d_lanes = _round_up(D, _LANE)
    o_lanes = _round_up(O, _LANE)
    d_sub = _round_up(D, _SUBLANE)
    x_blk = 2 * tm * d_lanes * 4           # double-buffered x blocks (f32)
    o_blk = 2 * tm * o_lanes * 4           # double-buffered out blocks (f32)
    w_res = 2 * d_sub * o_lanes * 4        # resident weight (count x2 to be safe)
    b_res = 2 * _SUBLANE * o_lanes * 4     # resident bias
    temps = 2 * tm * o_lanes * 4           # in-kernel logits / sigmoid temporaries
    return x_blk + o_blk + w_res + b_res + temps


def _pick_tm(B, D, O, budget_bytes=14 * 1024 * 1024, tm_cap=4096,
             min_total_steps=4):
    """Batch tile: big enough to amortize per-step overhead, small enough to
    (a) fit the VMEM budget and (b) give the grid >= min_total_steps steps so
    both v7x TensorCores are used and DMA overlaps compute."""
    # Tiny batch: one full-dim block (legal for any B; no pipelining to gain).
    if B <= _SUBLANE * min_total_steps:
        return B
    tm_steps_cap = _round_up(max(_SUBLANE, B // min_total_steps), _SUBLANE)
    tm = min(tm_cap, tm_steps_cap)
    tm = _round_up(tm, _SUBLANE)
    while tm > _SUBLANE and _vmem_need_bytes(tm, D, O) > budget_bytes:
        tm = max(_SUBLANE, (tm // 2) // _SUBLANE * _SUBLANE)
    return tm


def logistic_regression(x, w_t, b2d):
    """x: (B, D) f32; w_t: (D, O) f32; b2d: (1, O) f32.
    Returns sigmoid(x @ W^T + b) of shape (B, O) in f32."""
    B, D = x.shape
    O = w_t.shape[1]

    TM = _pick_tm(B, D, O)
    grid = (pl.cdiv(B, TM),)                       # ragged last block handled by Pallas

    # Explicit scoped-VMEM limit matched to TM (2x headroom over the conservative
    # estimate, capped well under every generation's physical VMEM).
    vmem_limit = int(min(32 * 1024 * 1024,
                         max(8 * 1024 * 1024, 2 * _vmem_need_bytes(TM, D, O))))

    return pl.pallas_call(
        _logreg_kernel,
        out_shape=jax.ShapeDtypeStruct((B, O), jnp.float32),
        grid=grid,
        in_specs=[
            pl.BlockSpec((TM, D), lambda i: (i, 0)),   # x: tiled over batch
            pl.BlockSpec((D, O), lambda i: (0, 0)),    # W: resident
            pl.BlockSpec((1, O), lambda i: (0, 0)),    # bias: resident
        ],
        out_specs=pl.BlockSpec((TM, O), lambda i: (i, 0)),  # real O columns only
        compiler_params=pltpu.CompilerParams(
            dimension_semantics=("parallel",),         # shard batch across TCs (v7x)
            vmem_limit_bytes=vmem_limit,
        ),
    )(x, w_t, b2d)


if __name__ == "__main__":
    key = jax.random.PRNGKey(0)
    kx, kw, kb, kx2 = jax.random.split(key, 4)

    # Shapes consistent with the module: input_dim=32, output_dim=8, batch=8.
    B, D, O = 8, 32, 8
    x = jax.random.normal(kx, (B, D), dtype=jnp.float32)
    bound = 1.0 / (D ** 0.5)
    weight = jax.random.uniform(kw, (O, D), minval=-bound, maxval=bound,
                                dtype=jnp.float32)
    bias = jax.random.uniform(kb, (O,), minval=-bound, maxval=bound,
                              dtype=jnp.float32)

    w_t, b2d = prepare_params(weight, bias)        # one-time param prep

    out = logistic_regression(x, w_t, b2d)
    out = jax.block_until_ready(out)
    ref = jax.nn.sigmoid(x @ weight.T + bias)
    assert out.shape == (B, O)
    assert jnp.allclose(out, ref, atol=1e-5, rtol=1e-5)

    # Second check: batch that does NOT divide the tile, exercising the
    # pad-free ragged last block path.
    B2 = 300
    x2 = jax.random.normal(kx2, (B2, D), dtype=jnp.float32)
    out2 = jax.block_until_ready(logistic_regression(x2, w_t, b2d))
    ref2 = jax.nn.sigmoid(x2 @ weight.T + bias)
    assert out2.shape == (B2, O)
    assert jnp.allclose(out2, ref2, atol=1e-5, rtol=1e-5)

    print("KERNEL_OK")
</pallas_src>

<mosaic_0001>
module attributes {stable_mosaic.version = 11 : i64} {
  func.func @_logreg_kernel(%arg0: i32, %arg1: memref<8x32xf32, #tpu.memory_space<vmem>>, %arg2: memref<32x8xf32, #tpu.memory_space<vmem>>, %arg3: memref<1x8xf32, #tpu.memory_space<vmem>>, %arg4: memref<8x8xf32, #tpu.memory_space<vmem>>) attributes {dimension_semantics = [#tpu.dimension_semantics<parallel>], iteration_bounds = array<i64: 1>, scalar_prefetch = 0 : i64, scratch_operands = 0 : i64, tpu.core_type = #tpu.core_type<tc>, window_params = [{transform_indices = @transform_0, window_bounds = array<i64: 8, 32>}, {pipeline_mode = #tpu.pipeline_mode<synchronous>, transform_indices = @transform_1, window_bounds = array<i64: 32, 8>}, {pipeline_mode = #tpu.pipeline_mode<synchronous>, transform_indices = @transform_2, window_bounds = array<i64: 1, 8>}, {transform_indices = @transform_3, window_bounds = array<i64: 8, 8>}]} {
    %c0 = arith.constant 0 : index
    %c0_0 = arith.constant 0 : index
    %0 = vector.load %arg1[%c0, %c0_0] : memref<8x32xf32, #tpu.memory_space<vmem>>, vector<8x32xf32>
    %c0_1 = arith.constant 0 : index
    %c0_2 = arith.constant 0 : index
    %1 = vector.load %arg2[%c0_1, %c0_2] : memref<32x8xf32, #tpu.memory_space<vmem>>, vector<32x8xf32>
    %cst = arith.constant dense<0.000000e+00> : vector<8x8xf32>
    %2 = tpu.matmul %0, %1, %cst {dimension_numbers = #tpu.dot_dimension_numbers<[1], [0], [0], [1], [0, 0, 1, 1], [], []>} : vector<8x32xf32>, vector<32x8xf32>, vector<8x8xf32> -> vector<8x8xf32>
    %c0_3 = arith.constant 0 : index
    %c0_4 = arith.constant 0 : index
    %3 = vector.load %arg3[%c0_3, %c0_4] : memref<1x8xf32, #tpu.memory_space<vmem>>, vector<1x8xf32>
    %4 = vector.broadcast %3 : vector<1x8xf32> to vector<8x8xf32>
    %5 = arith.addf %2, %4 : vector<8x8xf32>
    %6 = arith.negf %5 : vector<8x8xf32>
    %7 = math.exp %6 : vector<8x8xf32>
    %cst_5 = arith.constant 1.000000e+00 : f32
    %8 = vector.broadcast %cst_5 : f32 to vector<8x8xf32>
    %9 = arith.addf %8, %7 : vector<8x8xf32>
    %10 = arith.divf %8, %9 : vector<8x8xf32>
    %c0_6 = arith.constant 0 : index
    %c0_7 = arith.constant 0 : index
    %11 = vector.load %arg4[%c0_6, %c0_7] : memref<8x8xf32, #tpu.memory_space<vmem>>, vector<8x8xf32>
    tpu.vector_store %arg4[%c0_6, %c0_7], %10 {strides = array<i32>} : memref<8x8xf32, #tpu.memory_space<vmem>>, vector<8x8xf32>,
    return
  }
  func.func @transform_0(%arg0: i32) -> (i32, i32) {
    %c0_i32 = arith.constant 0 : i32
    %c0_i32_0 = arith.constant 0 : i32
    return %arg0, %c0_i32 : i32, i32
  }
  func.func @transform_1(%arg0: i32) -> (i32, i32) {
    %c0_i32 = arith.constant 0 : i32
    %c0_i32_0 = arith.constant 0 : i32
    %c0_i32_1 = arith.constant 0 : i32
    return %c0_i32, %c0_i32_0 : i32, i32
  }
  func.func @transform_2(%arg0: i32) -> (i32, i32) {
    %c0_i32 = arith.constant 0 : i32
    %c0_i32_0 = arith.constant 0 : i32
    %c0_i32_1 = arith.constant 0 : i32
    return %c0_i32, %c0_i32_0 : i32, i32
  }
  func.func @transform_3(%arg0: i32) -> (i32, i32) {
    %c0_i32 = arith.constant 0 : i32
    %c0_i32_0 = arith.constant 0 : i32
    return %arg0, %c0_i32 : i32, i32
  }
}

</mosaic_0001>

<llo_original>
// kernel: tpu_custom_call.1
$region0: #{tpu_custom_call.1}
  #allocation0 [shape = 'u32[]', space=smem, size = 0x4, offset = 0x4, fixed_abs, tag = 'smem constant byte address 0x4 - core index']
  #allocation1 [shape = 'u32[144,128]{1,0:T(1,128)}', space=vmem, size = 0x12000, scoped, tag = 'internal scratch']
  %s0 = inlined_call_operand.vmem [shape: f32[8,32], index: 0, kind: input, shape index: {}]
  %s1 = inlined_call_operand.vmem [shape: f32[32,8], index: 1, kind: input, shape index: {}]
  %s2 = inlined_call_operand.vmem [shape: f32[1,8], index: 2, kind: input, shape index: {}]
  %s3 = inlined_call_operand.hbm [shape: f32[8,8], index: 3, kind: output, shape index: {}]
  %s4 = sld [smem:[#allocation0]]
  $region22: #{tpu_custom_call.1} parent=0
    _
  %s6 = ssub.s32 1, %s4
  %s7 = scalar_select 0, %s6, %s4
  $region1: #{tpu_custom_call.1} parent=0
    #allocation2 [shape = 'u8[4096]{0}', space=vmem, size = 0x1000, scoped, tag = 'output window, operand 0, single buffered']
    #allocation3 [shape = 's32[1]{0}', space=sflag, size = 0x4, scoped, tag = 'scoped memory for tpu_custom_call.1']
    %8 = vsyncpa [#allocation3], 0
    // Predicated region
    $region2: #{tpu_custom_call.1} parent=1 // pred_check
      _
    $region3: #{tpu_custom_call.1} parent=1 // pred_check_branch
      %10 = sbr.rel (0) target = $region5
    $region4: #{tpu_custom_call.1} parent=1 // pred_region
      _
    $region5: #{tpu_custom_call.1} parent=1 // pred_fallthru
      _
    // Predicated region
    $region6: #{tpu_custom_call.1} parent=1 // pred_check
      _
    $region7: #{tpu_custom_call.1} parent=1 // pred_check_branch
      %12 = sbr.rel (0) target = $region9
    $region8: #{tpu_custom_call.1} parent=1 // pred_region
      _
    $region9: #{tpu_custom_call.1} parent=1 // pred_fallthru
      _
    // Predicated region
    $region10: #{tpu_custom_call.1} parent=1 // pred_check
      _
    $region11: #{tpu_custom_call.1} parent=1 // pred_check_branch
      %14 = sbr.rel (0) target = $region13
    $region12: #{tpu_custom_call.1} parent=1 // pred_region
      _
    $region13: #{tpu_custom_call.1} parent=1 // pred_fallthru
      _
    %v15 = vld [vmem:[%s0] sm:$0xff]
    %v16 = vld [vmem:[%s1] sm:$0xff]
    %v17 = vld [vmem:[%s1 + $0x8] sm:$0xff]
    %v18 = vld [vmem:[%s1 + $0x10] sm:$0xff]
    %v19 = vld [vmem:[%s1 + $0x18] sm:$0xff]
    %v20 = vld [vmem:[%s2] sm:$0x1]
    %v22 = vlaneseq
    %v23 = vshrl.u32 %v22, 7
    %v24 = vsub.s32 0, %v23
    %v25 = vrot.slane %v20, %v24
    %vm27 = vcmask 261120
    %v29 = vsel %vm27, %v15, 0
    %31 = vmatprep.subr.mxu0 0.0
    %32 = vmatpush1.msra.mxu0 %v16
    %33 = vmatprep.subr.mxu0 0.0
    %34 = vmatpush1.msra.mxu0 %v17
    %35 = vmatprep.subr.mxu0 0.0
    %36 = vmatpush1.msra.mxu0 %v18
    %37 = vmatprep.subr.mxu0 0.0
    %38 = vmatpush1.msra.mxu0 %v19
    %39 = vmatprep.subr.mxu0 0.0
    %40 = vmatpush1.msra.mxu0 0.0
    %41 = vmatprep.subr.mxu0 0.0
    %42 = vmatpush1.msra.mxu0 0.0
    %43 = vmatprep.subr.mxu0 0.0
    %44 = vmatpush1.msra.mxu0 0.0
    %45 = vmatprep.subr.mxu0 0.0
    %46 = vmatpush1.msra.mxu0 0.0
    %47 = vmatprep.subr.mxu0 0.0
    %48 = vmatpush1.msra.mxu0 0.0
    %49 = vmatprep.subr.mxu0 0.0
    %50 = vmatpush1.msra.mxu0 0.0
    %51 = vmatprep.subr.mxu0 0.0
    %52 = vmatpush1.msra.mxu0 0.0
    %53 = vmatprep.subr.mxu0 0.0
    %54 = vmatpush1.msra.mxu0 0.0
    %55 = vmatprep.subr.mxu0 0.0
    %56 = vmatpush1.msra.mxu0 0.0
    %57 = vmatprep.subr.mxu0 0.0
    %58 = vmatpush1.msra.mxu0 0.0
    %59 = vmatprep.subr.mxu0 0.0
    %60 = vmatpush1.msra.mxu0 0.0
    %61 = vmatprep.subr.mxu0 0.0
    %62 = vmatpush1.msra.mxu0 0.0
    %63 = vmatprep.subr.mxu0 0.0
    %64 = vmatpush1.msra.mxu0 0.0
    %65 = vmatprep.subr.mxu0 0.0
    %66 = vmatpush1.msra.mxu0 0.0
    %67 = vmatprep.subr.mxu0 0.0
    %68 = vmatpush1.msra.mxu0 0.0
    %69 = vmatprep.subr.mxu0 0.0
    %70 = vmatpush1.msra.mxu0 0.0
    %71 = vmatprep.subr.mxu0 0.0
    %72 = vmatpush1.msra.mxu0 0.0
    %73 = vmatprep.subr.mxu0 0.0
    %74 = vmatpush1.msra.mxu0 0.0
    %75 = vmatprep.subr.mxu0 0.0
    %76 = vmatpush1.msra.mxu0 0.0
    %77 = vmatprep.subr.mxu0 0.0
    %78 = vmatpush1.msra.mxu0 0.0
    %79 = vmatprep.subr.mxu0 0.0
    %80 = vmatpush1.msra.mxu0 0.0
    %81 = vmatprep.subr.mxu0 0.0
    %82 = vmatpush1.msra.mxu0 0.0
    %83 = vmatprep.subr.mxu0 0.0
    %84 = vmatpush1.msra.mxu0 0.0
    %85 = vmatprep.subr.mxu0 0.0
    %86 = vmatpush1.msra.mxu0 0.0
    %87 = vmatprep.subr.mxu0 0.0
    %88 = vmatpush1.msra.mxu0 0.0
    %89 = vmatprep.subr.mxu0 0.0
    %90 = vmatpush1.msra.mxu0 0.0
    %91 = vmatprep.subr.mxu0 0.0
    %92 = vmatpush1.msra.mxu0 0.0
    %93 = vmatprep.subr.mxu0 0.0
    %94 = vmatpush1.msra.mxu0 0.0
    %95 = vmatprep.mubr.f32.mxu0 0.0
    %96 = vmatmul.mubr.f32.gmra.mrb[0].mxu0 %v29
    %v97 = vpop.f32.mrb[0].mxu0
    %v98 = vadd.f32 %v25, %v97
    %v99 = vpop.f32.mrb[0].mxu0
    %100 = vdwg.mxu0
    %v101 = vxor.u32 %v98, 2147483648
    %v102 = vmul.f32 %v101, 1.442695
    %v103 = vpow.pop %v102
    %v104 = vadd.f32 %v103, 1.0
    %v105 = vrcp.pop %v104
    %v106 = vmul.f32 1.0, %v105
    %vm107 = vcmask 64512
    %108 = vst.msk [vmem:[#allocation2] sm:$0xff] %vm107, %v106
    // Predicated region
    $region14: #{tpu_custom_call.1} parent=1 // pred_check
      _
    $region15: #{tpu_custom_call.1} parent=1 // pred_check_branch
      %110 = sbr.rel (0) target = $region17
    $region16: #{tpu_custom_call.1} parent=1 // pred_region
      %s112 = ssub.s32 128, 128
      %113 = vsyncadd [#allocation3], %s112
      %s115 = sshll.u32 [#allocation2], 4
      %s116 = int_to_ptr.vmem [resolvable:$true] %s115
      %118 = dma.vmem_to_hbm [thread:$0]  %s116, 128, %s3, [#allocation3]
    $region17: #{tpu_custom_call.1} parent=1 // pred_fallthru
      _
    // Predicated region
    $region18: #{tpu_custom_call.1} parent=1 // pred_check
      _
    $region19: #{tpu_custom_call.1} parent=1 // pred_check_branch
      %120 = sbr.rel (0) target = $region21
    $region20: #{tpu_custom_call.1} parent=1 // pred_region
      %121 = dma.done [#allocation3], 128
    $region21: #{tpu_custom_call.1} parent=1 // pred_fallthru
      _
    %122 = vsyncpa [#allocation3], 1

</llo_original>
